<compile_context>
chip_gen: v5e
topology: v5e:2x2
jax: 0.10.0
libtpu: 0.0.40
codegen_flags: <defaults>
</compile_context>

<pallas_src>
import math
from functools import partial

import jax
import jax.numpy as jnp
from jax.experimental import pallas as pl
from jax.experimental.pallas import tpu as pltpu

EMBEDDING_DIM = 32   # config.EMBEDDING_DIM (small synthetic value)
PREV_CHANNELS = 4    # config.NUM_CHANNELS['efficientnet_b3'] (small synthetic value)

_INV_SQRT2 = 1.0 / math.sqrt(2.0)
_MAX_SPATIAL_TILE = 8192          # hard cap on lanes per spatial tile
_VMEM_TILE_BUDGET = 8 << 20       # bytes for double-buffered in+out blocks


def _gelu_exact(y):
    # exact GELU (matches torch.nn.GELU() default, erf formulation)
    return 0.5 * y * (1.0 + jax.lax.erf(y * _INV_SQRT2))


def _pick_spatial_tile(hw, cin, cout):
    """Largest multiple-of-128 spatial tile fitting the VMEM budget (f32, 2x buffered)."""
    per_lane_bytes = 4 * 2 * (cin + cout)          # in + out blocks, double-buffered
    cap = (_VMEM_TILE_BUDGET // per_lane_bytes) // 128 * 128
    cap = max(128, min(cap, _MAX_SPATIAL_TILE))
    return min(pl.cdiv(hw, 128) * 128, cap)


# ---------------------------------------------------------------------------
# Kernel 1: 1x1 conv (channel matmul) + bias + exact GELU, spatial on lanes.
#   x:(Cin,tile_s)  w:(Cout,Cin)  b:(Cout,1)  ->  o:(Cout,tile_s)
# ---------------------------------------------------------------------------
def _head_kernel(x_ref, w_ref, b_ref, o_ref):
    y = jnp.dot(w_ref[...], x_ref[...], preferred_element_type=jnp.float32) + b_ref[...]
    o_ref[...] = _gelu_exact(y).astype(o_ref.dtype)


# ---------------------------------------------------------------------------
# Kernel 2: same head with the global spatial max pool FUSED.
#   Output block (Cout,1) stays resident across the spatial grid axis and is
#   reduced in place (init at step 0, running max afterwards).  `need_mask`
#   is a static flag: padding mask is only emitted when HW is not tile-aligned.
# ---------------------------------------------------------------------------
def _head_pool_kernel(x_ref, w_ref, b_ref, o_ref, *, tile_s, hw, need_mask):
    s = pl.program_id(1)
    y = jnp.dot(w_ref[...], x_ref[...], preferred_element_type=jnp.float32) + b_ref[...]
    g = _gelu_exact(y)
    if need_mask:
        # Mask spatial padding (columns >= hw) so it cannot pollute the max.
        col = jax.lax.broadcasted_iota(jnp.int32, g.shape, 1) + s * tile_s
        g = jnp.where(col < hw, g, -jnp.inf)
    tile_max = jnp.max(g, axis=1, keepdims=True).astype(o_ref.dtype)  # (Cout, 1)

    @pl.when(s == 0)
    def _():
        o_ref[...] = tile_max

    @pl.when(s > 0)
    def _():
        o_ref[...] = jnp.maximum(o_ref[...], tile_max)


# ---------------------------------------------------------------------------
# Module wrapper (mirrors ImageFeatureExtractor.forward)
# ---------------------------------------------------------------------------
def init_params(key, prev_channels=PREV_CHANNELS, n_classes=EMBEDDING_DIM):
    """Deterministic init of the VisionLanguageHead 1x1 conv parameters.

    PyTorch shapes: conv.weight (n_classes, prev_channels, 1, 1), conv.bias (n_classes,)
    """
    kw, kb = jax.random.split(key)
    bound = 1.0 / math.sqrt(prev_channels)  # PyTorch Conv2d default init bound
    w = jax.random.uniform(kw, (n_classes, prev_channels, 1, 1),
                           minval=-bound, maxval=bound, dtype=jnp.float32)
    b = jax.random.uniform(kb, (n_classes,),
                           minval=-bound, maxval=bound, dtype=jnp.float32)
    return {"conv_w": w, "conv_b": b}


@partial(jax.jit, static_argnames=("flat_out", "return_feats"))
def image_feature_extractor_forward(params, x, flat_out=False, return_feats=True):
    """x: (B, C_prev, H, W) in NCHW -- treated as the last backbone feature map."""
    B, Cin, H, W = x.shape
    w = params["conv_w"][:, :, 0, 0].astype(jnp.float32)       # (Cout, Cin)
    b = params["conv_b"].reshape(-1, 1).astype(jnp.float32)    # (Cout, 1)
    Cout = w.shape[0]
    HW = H * W

    tile_s = _pick_spatial_tile(HW, Cin, Cout)
    HW_pad = pl.cdiv(HW, tile_s) * tile_s
    n_s = HW_pad // tile_s

    x_flat = x.reshape(B, Cin, HW)                              # NCHW -> (B, Cin, HW), no transpose
    if HW_pad != HW:
        x_flat = jnp.pad(x_flat, ((0, 0), (0, 0), (0, HW_pad - HW)))

    in_specs = [
        pl.BlockSpec((None, Cin, tile_s), lambda bi, si: (bi, 0, si)),
        pl.BlockSpec((Cout, Cin), lambda bi, si: (0, 0)),
        pl.BlockSpec((Cout, 1), lambda bi, si: (0, 0)),
    ]

    if return_feats:
        feats = pl.pallas_call(
            _head_kernel,
            out_shape=jax.ShapeDtypeStruct((B, Cout, HW_pad), jnp.float32),
            grid_spec=pltpu.PrefetchScalarGridSpec(
                num_scalar_prefetch=0,
                grid=(B, n_s),
                in_specs=in_specs,
                out_specs=pl.BlockSpec((None, Cout, tile_s), lambda bi, si: (bi, 0, si)),
            ),
            compiler_params=pltpu.CompilerParams(
                dimension_semantics=("parallel", "parallel")),
        )(x_flat, w, b)
        if HW_pad != HW:
            feats = feats[:, :, :HW]
        feats = feats.reshape(B, Cout, H, W)                    # already NCHW order
        if flat_out:
            return feats.reshape(B, -1)                         # (B, Cout*H*W)
        return feats
    else:
        pooled = pl.pallas_call(
            partial(_head_pool_kernel, tile_s=tile_s, hw=HW, need_mask=(HW_pad != HW)),
            out_shape=jax.ShapeDtypeStruct((B, Cout, 1), jnp.float32),
            grid_spec=pltpu.PrefetchScalarGridSpec(
                num_scalar_prefetch=0,
                grid=(B, n_s),
                in_specs=in_specs,
                out_specs=pl.BlockSpec((None, Cout, 1), lambda bi, si: (bi, 0, 0)),
            ),
            compiler_params=pltpu.CompilerParams(
                dimension_semantics=("parallel", "arbitrary")),
        )(x_flat, w, b)
        if flat_out:
            return pooled.reshape(B, Cout)                      # (B, Cout)
        return pooled.reshape(B, Cout, 1, 1)                    # AdaptiveMaxPool2d((1,1))


if __name__ == "__main__":
    key = jax.random.PRNGKey(0)
    k_param, k_x = jax.random.split(key)

    params = init_params(k_param)

    # Small synthetic "last backbone feature map": (B=2, C=4, H=16, W=16), NCHW.
    x = jax.random.normal(k_x, (2, PREV_CHANNELS, 16, 16), dtype=jnp.float32)

    feats = image_feature_extractor_forward(params, x, flat_out=False, return_feats=True)
    pooled_flat = image_feature_extractor_forward(params, x, flat_out=True, return_feats=False)
    pooled_4d = image_feature_extractor_forward(params, x, flat_out=False, return_feats=False)
    jax.block_until_ready((feats, pooled_flat, pooled_4d))

    # Sanity check against a pure-JAX reference.
    w_mat = params["conv_w"][:, :, 0, 0]                        # (Cout, Cin)
    y_ref = jnp.einsum("oc,bchw->bohw", w_mat, x) + params["conv_b"][None, :, None, None]
    g_ref = 0.5 * y_ref * (1.0 + jax.lax.erf(y_ref * _INV_SQRT2))
    pooled_ref = jnp.max(g_ref, axis=(2, 3))

    assert feats.shape == (2, EMBEDDING_DIM, 16, 16)
    assert pooled_flat.shape == (2, EMBEDDING_DIM)
    assert pooled_4d.shape == (2, EMBEDDING_DIM, 1, 1)
    assert jnp.allclose(feats, g_ref, atol=1e-5, rtol=1e-5)
    assert jnp.allclose(pooled_flat, pooled_ref, atol=1e-5, rtol=1e-5)
    assert jnp.allclose(pooled_4d.reshape(2, EMBEDDING_DIM), pooled_ref, atol=1e-5, rtol=1e-5)

    # Also exercise a non-128-aligned spatial size to cover the padded/masked path.
    x_odd = jax.random.normal(k_x, (2, PREV_CHANNELS, 10, 10), dtype=jnp.float32)
    pooled_odd = image_feature_extractor_forward(params, x_odd, flat_out=True, return_feats=False)
    y_odd = jnp.einsum("oc,bchw->bohw", w_mat, x_odd) + params["conv_b"][None, :, None, None]
    g_odd = 0.5 * y_odd * (1.0 + jax.lax.erf(y_odd * _INV_SQRT2))
    assert jnp.allclose(pooled_odd, jnp.max(g_odd, axis=(2, 3)), atol=1e-5, rtol=1e-5)

    print("KERNEL_OK")
</pallas_src>

<mosaic_0001>
module attributes {stable_mosaic.version = 11 : i64} {
  func.func @_head_kernel(%arg0: i32, %arg1: i32, %arg2: memref<1x4x256xf32, #tpu.memory_space<vmem>>, %arg3: memref<32x4xf32, #tpu.memory_space<vmem>>, %arg4: memref<32x1xf32, #tpu.memory_space<vmem>>, %arg5: memref<1x32x256xf32, #tpu.memory_space<vmem>>) attributes {dimension_semantics = [#tpu.dimension_semantics<parallel>, #tpu.dimension_semantics<parallel>], iteration_bounds = array<i64: 2, 1>, scalar_prefetch = 0 : i64, scratch_operands = 0 : i64, tpu.core_type = #tpu.core_type<tc>, window_params = [{transform_indices = @transform_0, window_bounds = array<i64: 1, 4, 256>}, {pipeline_mode = #tpu.pipeline_mode<synchronous>, transform_indices = @transform_1, window_bounds = array<i64: 32, 4>}, {pipeline_mode = #tpu.pipeline_mode<synchronous>, transform_indices = @transform_2, window_bounds = array<i64: 32, 1>}, {transform_indices = @transform_3, window_bounds = array<i64: 1, 32, 256>}]} {
    %c0 = arith.constant 0 : index
    %c0_0 = arith.constant 0 : index
    %0 = vector.load %arg3[%c0, %c0_0] : memref<32x4xf32, #tpu.memory_space<vmem>>, vector<32x4xf32>
    %c0_1 = arith.constant 0 : index
    %c0_2 = arith.constant 0 : index
    %c0_3 = arith.constant 0 : index
    %1 = vector.load %arg2[%c0_1, %c0_2, %c0_3] : memref<1x4x256xf32, #tpu.memory_space<vmem>>, vector<1x4x256xf32>
    %2 = vector.shape_cast %1 : vector<1x4x256xf32> to vector<4x256xf32>
    %cst = arith.constant dense<0.000000e+00> : vector<32x256xf32>
    %3 = tpu.matmul %0, %2, %cst {dimension_numbers = #tpu.dot_dimension_numbers<[1], [0], [0], [1], [0, 0, 1, 1], [], []>} : vector<32x4xf32>, vector<4x256xf32>, vector<32x256xf32> -> vector<32x256xf32>
    %c0_4 = arith.constant 0 : index
    %c0_5 = arith.constant 0 : index
    %4 = vector.load %arg4[%c0_4, %c0_5] : memref<32x1xf32, #tpu.memory_space<vmem>>, vector<32x1xf32>
    %5 = vector.broadcast %4 : vector<32x1xf32> to vector<32x256xf32>
    %6 = arith.addf %3, %5 : vector<32x256xf32>
    %cst_6 = arith.constant 5.000000e-01 : f32
    %7 = vector.broadcast %cst_6 : f32 to vector<32x256xf32>
    %8 = arith.mulf %7, %6 : vector<32x256xf32>
    %cst_7 = arith.constant 0.707106769 : f32
    %9 = vector.broadcast %cst_7 : f32 to vector<32x256xf32>
    %10 = arith.mulf %6, %9 : vector<32x256xf32>
    %11 = math.erf %10 : vector<32x256xf32>
    %cst_8 = arith.constant 1.000000e+00 : f32
    %12 = vector.broadcast %cst_8 : f32 to vector<32x256xf32>
    %13 = arith.addf %12, %11 : vector<32x256xf32>
    %14 = arith.mulf %8, %13 : vector<32x256xf32>
    %c0_9 = arith.constant 0 : index
    %c0_10 = arith.constant 0 : index
    %c0_11 = arith.constant 0 : index
    %15 = vector.load %arg5[%c0_9, %c0_10, %c0_11] : memref<1x32x256xf32, #tpu.memory_space<vmem>>, vector<1x32x256xf32>
    %16 = vector.shape_cast %15 : vector<1x32x256xf32> to vector<32x256xf32>
    %17 = vector.shape_cast %14 : vector<32x256xf32> to vector<1x32x256xf32>
    tpu.vector_store %arg5[%c0_9, %c0_10, %c0_11], %17 {strides = array<i32>} : memref<1x32x256xf32, #tpu.memory_space<vmem>>, vector<1x32x256xf32>,
    return
  }
  func.func @transform_0(%arg0: i32, %arg1: i32) -> (i32, i32, i32) {
    %c0_i32 = arith.constant 0 : i32
    %c0_i32_0 = arith.constant 0 : i32
    return %arg0, %c0_i32, %arg1 : i32, i32, i32
  }
  func.func @transform_1(%arg0: i32, %arg1: i32) -> (i32, i32) {
    %c0_i32 = arith.constant 0 : i32
    %c0_i32_0 = arith.constant 0 : i32
    %c0_i32_1 = arith.constant 0 : i32
    return %c0_i32, %c0_i32_0 : i32, i32
  }
  func.func @transform_2(%arg0: i32, %arg1: i32) -> (i32, i32) {
    %c0_i32 = arith.constant 0 : i32
    %c0_i32_0 = arith.constant 0 : i32
    %c0_i32_1 = arith.constant 0 : i32
    return %c0_i32, %c0_i32_0 : i32, i32
  }
  func.func @transform_3(%arg0: i32, %arg1: i32) -> (i32, i32, i32) {
    %c0_i32 = arith.constant 0 : i32
    %c0_i32_0 = arith.constant 0 : i32
    return %arg0, %c0_i32, %arg1 : i32, i32, i32
  }
}

</mosaic_0001>

<llo_original>
// kernel: image_feature_extractor_forward.1
$region0: #{image_feature_extractor_forward.1}
  #allocation0 [shape = 'u32[]', space=smem, size = 0x4, offset = 0x4, fixed_abs, tag = 'smem constant byte address 0x4 - core index']
  #allocation1 [shape = 'u32[72,128]{1,0:T(1,128)}', space=vmem, size = 0x9000, scoped, tag = 'internal scratch']
  %s0 = inlined_call_operand.vmem [shape: f32[2,4,256], index: 0, kind: input, shape index: {}]
  %s1 = inlined_call_operand.vmem [shape: f32[32,4], index: 1, kind: input, shape index: {}]
  %s2 = inlined_call_operand.vmem [shape: f32[32,1], index: 2, kind: input, shape index: {}]
  %s3 = inlined_call_operand.vmem [shape: f32[2,32,256], index: 3, kind: output, shape index: {}]
  %s4 = sld [smem:[#allocation0]]
  $region45: #{image_feature_extractor_forward.1} parent=0
    _
  %s6 = ssub.s32 1, %s4
  %s7 = scalar_select 0, %s6, %s4
  loop: start=0, step=1, limit=4
  $region2: #{image_feature_extractor_forward.1} parent=0 // loop_pre_header
    _
  $region3: #{image_feature_extractor_forward.1} parent=0 // loop_header
    %s9 = sphi 0, %s13
    %p10 = scmp.ge.s32.totalorder %s9, 4
    %s16 = sphi 0, %s28
    %s17 = sphi 0, %s24
    %s18 = sphi 0, %s16
    %s19 = sphi 0, %s17
    %s20 = sphi 0, %s18
    %s21 = sphi 0, %s19
    %s33 = sphi 0, %s35
    %s36 = sphi 0, %s33
    %s37 = sphi 0, %s36
    %s53 = sphi 0, %s37
    %s57 = sphi 0, %s57
    %s59 = sphi 0, %s57
    %s60 = sphi 0, %s59
    %s74 = sphi 0, %s60
    %s78 = sphi 0, %s78
    %s80 = sphi 0, %s78
    %s81 = sphi 0, %s80
    %s95 = sphi 0, %s81
    %s103 = sphi 0, %s105
    %s106 = sphi 0, %s103
    %s107 = sphi 0, %s106
    %s123 = sphi 0, %s107
  $region4: #{image_feature_extractor_forward.1} parent=0 // loop_header_branch
    %12 = sbr.rel (%p10) target = $region8
  $region5: #{image_feature_extractor_forward.1} parent=0 // loop_body
    %s14 = ssub.s32 %s9, 1
    %s15 = ssub.s32 %s9, 2
    %s22 = sadd.s32 1, %s17
    %p23 = scmp.ge.s32.totalorder %s22, 1
    %s24 = scalar_select %p23, 0, %s22
    %s25 = sadd.s32 1, %s16
    %s26 = scalar_select %p23, %s25, %s16
    %p27 = scmp.ge.s32.totalorder %s26, 2
    %s28 = scalar_select %p27, 0, %s26
    %s29 = ssub.s32 %s16, %s28
    %s30 = ssub.s32 %s17, %s24
    %s31 = sor.u32 %s29, %s30
    %p32 = scmp.eq.s32.totalorder %s31, 0
    %s34 = sadd.s32 %s33, 1
    %s35 = scalar_select %p32, %s33, %s34
    %p38 = pneg %p32
    %p39 = scmp.eq.s32.totalorder %s9, 1
    %p40 = por %p38, %p39
    %p41 = scmp.ne.s32.totalorder %s33, %s36
    %p42 = scmp.eq.s32.totalorder %s9, 0
    %p43 = por %p41, %p42
    %p44 = scmp.ne.s32.totalorder %s33, %s36
    %p45 = scmp.eq.s32.totalorder %s14, 1
    %p46 = por %p44, %p45
    %p47 = scmp.ne.s32.totalorder %s36, %s37
    %p48 = scmp.eq.s32.totalorder %s14, 0
    %p49 = por %p47, %p48
    %p50 = scmp.ne.s32.totalorder %s36, %s37
    %p51 = scmp.eq.s32.totalorder %s15, 1
    %p52 = por %p50, %p51
    %p54 = scmp.ne.s32.totalorder %s37, %s53
    %p55 = scmp.eq.s32.totalorder %s15, 0
    %p56 = por %p54, %p55
    %s58 = sadd.s32 %s57, 1
    %p61 = scmp.eq.s32.totalorder %s9, 1
    %p62 = scmp.ne.s32.totalorder %s57, %s59
    %p63 = scmp.eq.s32.totalorder %s9, 0
    %p64 = por %p62, %p63
    %p65 = scmp.ne.s32.totalorder %s57, %s59
    %p66 = scmp.eq.s32.totalorder %s14, 1
    %p67 = por %p65, %p66
    %p68 = scmp.ne.s32.totalorder %s59, %s60
    %p69 = scmp.eq.s32.totalorder %s14, 0
    %p70 = por %p68, %p69
    %p71 = scmp.ne.s32.totalorder %s59, %s60
    %p72 = scmp.eq.s32.totalorder %s15, 1
    %p73 = por %p71, %p72
    %p75 = scmp.ne.s32.totalorder %s60, %s74
    %p76 = scmp.eq.s32.totalorder %s15, 0
    %p77 = por %p75, %p76
    %s79 = sadd.s32 %s78, 1
    %p82 = scmp.eq.s32.totalorder %s9, 1
    %p83 = scmp.ne.s32.totalorder %s78, %s80
    %p84 = scmp.eq.s32.totalorder %s9, 0
    %p85 = por %p83, %p84
    %p86 = scmp.ne.s32.totalorder %s78, %s80
    %p87 = scmp.eq.s32.totalorder %s14, 1
    %p88 = por %p86, %p87
    %p89 = scmp.ne.s32.totalorder %s80, %s81
    %p90 = scmp.eq.s32.totalorder %s14, 0
    %p91 = por %p89, %p90
    %p92 = scmp.ne.s32.totalorder %s80, %s81
    %p93 = scmp.eq.s32.totalorder %s15, 1
    %p94 = por %p92, %p93
    %p96 = scmp.ne.s32.totalorder %s81, %s95
    %p97 = scmp.eq.s32.totalorder %s15, 0
    %p98 = por %p96, %p97
    %s99 = ssub.s32 %s16, %s28
    %s100 = ssub.s32 %s17, %s24
    %s101 = sor.u32 %s99, %s100
    %p102 = scmp.eq.s32.totalorder %s101, 0
    %s104 = sadd.s32 %s103, 1
    %s105 = scalar_select %p102, %s103, %s104
    %p108 = pneg %p102
    %p109 = scmp.eq.s32.totalorder %s9, 1
    %p110 = por %p108, %p109
    %p111 = scmp.ne.s32.totalorder %s103, %s106
    %p112 = scmp.eq.s32.totalorder %s9, 0
    %p113 = por %p111, %p112
    %p114 = scmp.ne.s32.totalorder %s103, %s106
    %p115 = scmp.eq.s32.totalorder %s14, 1
    %p116 = por %p114, %p115
    %p117 = scmp.ne.s32.totalorder %s106, %s107
    %p118 = scmp.eq.s32.totalorder %s14, 0
    %p119 = por %p117, %p118
    %p120 = scmp.ne.s32.totalorder %s106, %s107
    %p121 = scmp.eq.s32.totalorder %s15, 1
    %p122 = por %p120, %p121
    %p124 = scmp.ne.s32.totalorder %s107, %s123
    %p125 = scmp.eq.s32.totalorder %s15, 0
    %p126 = por %p124, %p125
    %p127 = scmp.le.s32.totalorder 1, %s9
    %p128 = scmp.lt.s32.totalorder %s9, 3
    %p129 = pnand %p127, %p128
    %p130 = pneg %p129
    // Predicated region
    $region9: #{image_feature_extractor_forward.1} parent=5 // pred_check
      _
    $region10: #{image_feature_extractor_forward.1} parent=5 // pred_check_branch
      %132 = sbr.rel (%p129) target = $region12
    $region11: #{image_feature_extractor_forward.1} parent=5 // pred_region
      %s133 = ssub.s32 %s9, 1
      // Predicated region
      $region13: #{image_feature_extractor_forward.1} parent=11 // pred_check
        %p134 = pneg %p70
      $region14: #{image_feature_extractor_forward.1} parent=11 // pred_check_branch
        %136 = sbr.rel (%p134) target = $region16
      $region15: #{image_feature_extractor_forward.1} parent=11 // pred_region
        _
      $region16: #{image_feature_extractor_forward.1} parent=11 // pred_fallthru
        _
      // Predicated region
      $region17: #{image_feature_extractor_forward.1} parent=11 // pred_check
        %p137 = pneg %p91
      $region18: #{image_feature_extractor_forward.1} parent=11 // pred_check_branch
        %139 = sbr.rel (%p137) target = $region20
      $region19: #{image_feature_extractor_forward.1} parent=11 // pred_region
        _
      $region20: #{image_feature_extractor_forward.1} parent=11 // pred_fallthru
        _
    $region12: #{image_feature_extractor_forward.1} parent=5 // pred_fallthru
      _
    %p140 = scmp.lt.s32.totalorder %s9, 2
    // Predicated region
    $region21: #{image_feature_extractor_forward.1} parent=5 // pred_check
      %p141 = pneg %p140
    $region22: #{image_feature_extractor_forward.1} parent=5 // pred_check_branch
      %143 = sbr.rel (%p141) target = $region24
    $region23: #{image_feature_extractor_forward.1} parent=5 // pred_region
      // Predicated region
      $region25: #{image_feature_extractor_forward.1} parent=23 // pred_check
        %p144 = pneg %p43
      $region26: #{image_feature_extractor_forward.1} parent=23 // pred_check_branch
        %146 = sbr.rel (%p144) target = $region28
      $region27: #{image_feature_extractor_forward.1} parent=23 // pred_region
        %s147 = smul.u32 2, %s17
        %p148 = scmp.lt.s32.totalorder %s16, 1
        %s149 = scalar_select %p148, %s16, 1
        %p150 = scmp.lt.s32.totalorder %s147, 1
        %s151 = scalar_select %p150, %s147, 1
        %s152 = smul.addr %s149, 2
        %s153 = sadd.s32 %s151, %s152
        %s154 = smul.addr %s153, 4
        %s155 = scalar_lea.vmem %s0, %s154
        %s156 = smul.u32 2, %s17
      $region28: #{image_feature_extractor_forward.1} parent=23 // pred_fallthru
        _
    $region24: #{image_feature_extractor_forward.1} parent=5 // pred_fallthru
      _
    %p157 = scmp.le.s32.totalorder 1, %s9
    %p158 = scmp.lt.s32.totalorder %s9, 3
    %p159 = pnand %p157, %p158
    %p160 = pneg %p159
    // Predicated region
    $region29: #{image_feature_extractor_forward.1} parent=5 // pred_check
      _
    $region30: #{image_feature_extractor_forward.1} parent=5 // pred_check_branch
      %162 = sbr.rel (%p159) target = $region32
    $region31: #{image_feature_extractor_forward.1} parent=5 // pred_region
      %s163 = ssub.s32 %s9, 1
      %s164 = smul.u32 2, %s19
      %p165 = scmp.lt.s32.totalorder %s18, 1
      %s166 = scalar_select %p165, %s18, 1
      %p167 = scmp.lt.s32.totalorder %s164, 1
      %s168 = scalar_select %p167, %s164, 1
      %s169 = smul.addr %s166, 2
      %s170 = sadd.s32 %s168, %s169
      %s171 = smul.addr %s170, 4
      %s172 = scalar_lea.vmem %s0, %s171
      %p173 = pneg %p49
      %p174 = pneg %p46
      %p175 = pneg %p70
      %p176 = pneg %p67
      %p177 = pneg %p91
      %p178 = pneg %p88
      %p179 = pneg %p119
      %p180 = pneg %p116
      %s181 = smul.u32 2, %s19
      %p182 = scmp.lt.s32.totalorder %s18, 1
      %s183 = scalar_select %p182, %s18, 1
      %p184 = scmp.lt.s32.totalorder %s181, 1
      %s185 = scalar_select %p184, %s181, 1
      %s186 = smul.addr %s183, 8
      %s187 = sadd.s32 %s185, %s186
      %s188 = smul.addr %s187, 8
      %s189 = scalar_lea.vmem %s3, %s188
      %s190 = smul.u32 2, %s19
      %p191 = scmp.lt.s32.totalorder %s18, 1
      %s192 = scalar_select %p191, %s18, 1
      %p193 = scmp.lt.s32.totalorder %s190, 1
      %s194 = scalar_select %p193, %s190, 1
      %s195 = smul.addr %s192, 2
      %s196 = sadd.s32 %s194, %s195
      %s197 = smul.addr %s196, 4
      %s198 = scalar_lea.vmem %s0, %s197
      %s199 = smul.u32 2, %s19
      %s200 = smul.u32 2, %s19
      %p201 = scmp.lt.s32.totalorder %s18, 1
      %s202 = scalar_select %p201, %s18, 1
      %p203 = scmp.lt.s32.totalorder %s200, 1
      %s204 = scalar_select %p203, %s200, 1
      %s205 = smul.addr %s202, 8
      %s206 = sadd.s32 %s204, %s205
      %s207 = smul.addr %s206, 8
      %s208 = scalar_lea.vmem %s3, %s207
      %s209 = smul.u32 2, %s19
      %v210 = vld [vmem:[%s1] sm:$0xff]
      %v211 = vld [vmem:[%s1 + $0x8] sm:$0xff]
      %v212 = vld [vmem:[%s1 + $0x10] sm:$0xff]
      %v213 = vld [vmem:[%s1 + $0x18] sm:$0xff]
      %v214 = vld [vmem:[%s198] sm:$0xff]
      %v215 = vld [vmem:[%s2] sm:$0xff]
      %v216 = vld [vmem:[%s2 + $0x8] sm:$0xff]
      %v217 = vld [vmem:[%s2 + $0x10] sm:$0xff]
      %v218 = vld [vmem:[%s2 + $0x18] sm:$0xff]
      %220 = vset.pattern.permute.xlu0 0
      %221 = vperm.xlu0 %220, %v215
      %v222 = vpop.permute.xlu0 %221
      %225 = vset.pattern.permute.xlu0 0
      %226 = vperm.xlu0 %225, %v216
      %v227 = vpop.permute.xlu0 %226
      %230 = vset.pattern.permute.xlu0 0
      %231 = vperm.xlu0 %230, %v217
      %v232 = vpop.permute.xlu0 %231
      %235 = vset.pattern.permute.xlu0 0
      %236 = vperm.xlu0 %235, %v218
      %v237 = vpop.permute.xlu0 %236
      %240 = vst [vmem:[#allocation1] ss:$2 sm:$0xff] %v214
      %v241 = vld.sshfl [vmem:[#allocation1] sm:$0xff pattern:$0x75316420]
      %v242 = vld.sshfl [vmem:[#allocation1 + $0x8] sm:$0xff pattern:$0x75316420]
      %vm243 = vcmask 31744
      %v245 = vsel %vm243, %v210, 0
      %v248 = vsel %vm243, %v211, 0
      %v251 = vsel %vm243, %v212, 0
      %v254 = vsel %vm243, %v213, 0
      %vm256 = vcmask 1043456
      %v257 = vsel %vm256, %v241, 0
      %v259 = vsel %vm256, %v242, 0
      %261 = vmatpush.msra.mxu0 0.0
      %262 = vmatpush.msra.mxu0 0.0
      %263 = vmatpush.msra.mxu0 0.0
      %264 = vmatpush.msra.mxu0 0.0
      %265 = vmatpush.msra.mxu0 0.0
      %266 = vmatpush.msra.mxu0 0.0
      %267 = vmatpush.msra.mxu0 0.0
      %268 = vmatpush.msra.mxu0 0.0
      %269 = vmatpush.msra.mxu0 0.0
      %270 = vmatpush.msra.mxu0 0.0
      %271 = vmatpush.msra.mxu0 0.0
      %272 = vmatpush.msra.mxu0 0.0
      %273 = vmatpush.msra.mxu0 0.0
      %274 = vmatpush.msra.mxu0 0.0
      %275 = vmatpush.msra.mxu0 0.0
      %276 = vmatpush.msra.mxu0 %v257
      %277 = vmatmul.f32.gmra.mxu0 %v245
      %v278 = vpop.f32.mrf.mxu0
      %v279 = vadd.f32 %v222, %v278
      %280 = vmatmul.f32.gmra.mxu0 %v248
      %v281 = vpop.f32.mrf.mxu0
      %v282 = vadd.f32 %v227, %v281
      %283 = vmatmul.f32.gmra.mxu0 %v251
      %v284 = vpop.f32.mrf.mxu0
      %v285 = vadd.f32 %v232, %v284
      %286 = vmatmul.f32.gmra.mxu0 %v254
      %v287 = vpop.f32.mrf.mxu0
      %v288 = vadd.f32 %v237, %v287
      %289 = vdwg.mxu0
      %290 = vmatpush.msra.mxu0 0.0
      %291 = vmatpush.msra.mxu0 0.0
      %292 = vmatpush.msra.mxu0 0.0
      %293 = vmatpush.msra.mxu0 0.0
      %294 = vmatpush.msra.mxu0 0.0
      %295 = vmatpush.msra.mxu0 0.0
      %296 = vmatpush.msra.mxu0 0.0
      %297 = vmatpush.msra.mxu0 0.0
      %298 = vmatpush.msra.mxu0 0.0
      %299 = vmatpush.msra.mxu0 0.0
      %300 = vmatpush.msra.mxu0 0.0
      %301 = vmatpush.msra.mxu0 0.0
      %302 = vmatpush.msra.mxu0 0.0
      %303 = vmatpush.msra.mxu0 0.0
      %304 = vmatpush.msra.mxu0 0.0
      %305 = vmatpush.msra.mxu0 %v259
      %306 = vmatmul.f32.gmra.mxu0 %v245
      %v307 = vpop.f32.mrf.mxu0
      %v308 = vadd.f32 %v222, %v307
      %309 = vmatmul.f32.gmra.mxu0 %v248
      %v310 = vpop.f32.mrf.mxu0
      %v311 = vadd.f32 %v227, %v310
      %312 = vmatmul.f32.gmra.mxu0 %v251
      %v313 = vpop.f32.mrf.mxu0
      %v314 = vadd.f32 %v232, %v313
      %315 = vmatmul.f32.gmra.mxu0 %v254
      %v316 = vpop.f32.mrf.mxu0
      %v317 = vadd.f32 %v237, %v316
      %318 = vdwg.mxu0
      %v319 = vmul.f32 %v279, 0.5
      %v320 = vmul.f32 %v308, 0.5
      %v321 = vmul.f32 %v282, 0.5
      %v322 = vmul.f32 %v311, 0.5
      %v323 = vmul.f32 %v285, 0.5
      %v324 = vmul.f32 %v314, 0.5
      %v325 = vmul.f32 %v288, 0.5
      %v326 = vmul.f32 %v317, 0.5
      %v327 = vmul.f32 %v279, 0.70710677
      %v328 = vmul.f32 %v308, 0.70710677
      %v329 = vmul.f32 %v282, 0.70710677
      %v330 = vmul.f32 %v311, 0.70710677
      %v331 = vmul.f32 %v285, 0.70710677
      %v332 = vmul.f32 %v314, 0.70710677
      %v333 = vmul.f32 %v288, 0.70710677
      %v334 = vmul.f32 %v317, 0.70710677
      %v335 = vmul.f32 %v327, %v327
      %v336 = vmin.f32 16.0, %v335
      %v337 = vmul.f32 %v336, 2.1237322e-06
      %v338 = vadd.f32 %v337, 0.00028619796
      %v339 = vmul.f32 %v336, %v338
      %v340 = vadd.f32 %v339, 0.0036580483
      %v341 = vmul.f32 %v336, %v340
      %v342 = vadd.f32 %v341, 0.05243302
      %v343 = vmul.f32 %v336, %v342
      %v344 = vadd.f32 %v343, 0.18741608
      %v345 = vmul.f32 %v336, %v344
      %v346 = vadd.f32 %v345, 1.1283791
      %v347 = vmul.f32 %v327, %v346
      %v348 = vmul.f32 %v336, 3.8918573e-05
      %v349 = vadd.f32 %v348, 0.001143296
      %v350 = vmul.f32 %v336, %v349
      %v351 = vadd.f32 %v350, 0.014752088
      %v352 = vmul.f32 %v336, %v351
      %v353 = vadd.f32 %v352, 0.112945676
      %v354 = vmul.f32 %v336, %v353
      %v355 = vadd.f32 %v354, 0.4994258
      %v356 = vmul.f32 %v336, %v355
      %v357 = vadd.f32 %v356, 1.0
      %v358 = vrcp.pop %v357
      %v359 = vmul.f32 %v357, %v358
      %v360 = vsub.f32 1.0, %v359
      %v361 = vmul.f32 %v358, %v360
      %v362 = vadd.f32 %v358, %v361
      %vm363 = vweird.f32 %v357
      %vm364 = vweird.f32 %v358
      %vm365 = vmor %vm363, %vm364
      %v366 = vsel %vm365, %v358, %v362
      %v367 = vand.u32 2147483647, %v357
      %vm368 = vcmp.eq.f32.partialorder %v367, 8.507059e+37
      %v369 = vand.u32 %v357, 2147483648
      %v370 = vor.u32 1.1754944e-38, %v369
      %v371 = vsel %vm368, %v370, %v366
      %v372 = vmul.f32 %v347, %v371
      %v373 = vmin.f32 %v372, 1.0
      %v374 = vmax.f32 %v373, -1.0
      %v375 = vmul.f32 %v328, %v328
      %v376 = vmin.f32 16.0, %v375
      %v377 = vmul.f32 %v376, 2.1237322e-06
      %v378 = vadd.f32 %v377, 0.00028619796
      %v379 = vmul.f32 %v376, %v378
      %v380 = vadd.f32 %v379, 0.0036580483
      %v381 = vmul.f32 %v376, %v380
      %v382 = vadd.f32 %v381, 0.05243302
      %v383 = vmul.f32 %v376, %v382
      %v384 = vadd.f32 %v383, 0.18741608
      %v385 = vmul.f32 %v376, %v384
      %v386 = vadd.f32 %v385, 1.1283791
      %v387 = vmul.f32 %v328, %v386
      %v388 = vmul.f32 %v376, 3.8918573e-05
      %v389 = vadd.f32 %v388, 0.001143296
      %v390 = vmul.f32 %v376, %v389
      %v391 = vadd.f32 %v390, 0.014752088
      %v392 = vmul.f32 %v376, %v391
      %v393 = vadd.f32 %v392, 0.112945676
      %v394 = vmul.f32 %v376, %v393
      %v395 = vadd.f32 %v394, 0.4994258
      %v396 = vmul.f32 %v376, %v395
      %v397 = vadd.f32 %v396, 1.0
      %v398 = vrcp.pop %v397
      %v399 = vmul.f32 %v397, %v398
      %v400 = vsub.f32 1.0, %v399
      %v401 = vmul.f32 %v398, %v400
      %v402 = vadd.f32 %v398, %v401
      %vm403 = vweird.f32 %v397
      %vm404 = vweird.f32 %v398
      %vm405 = vmor %vm403, %vm404
      %v406 = vsel %vm405, %v398, %v402
      %v407 = vand.u32 2147483647, %v397
      %vm408 = vcmp.eq.f32.partialorder %v407, 8.507059e+37
      %v409 = vand.u32 %v397, 2147483648
      %v410 = vor.u32 1.1754944e-38, %v409
      %v411 = vsel %vm408, %v410, %v406
      %v412 = vmul.f32 %v387, %v411
      %v413 = vmin.f32 %v412, 1.0
      %v414 = vmax.f32 %v413, -1.0
      %v415 = vmul.f32 %v329, %v329
      %v416 = vmin.f32 16.0, %v415
      %v417 = vmul.f32 %v416, 2.1237322e-06
      %v418 = vadd.f32 %v417, 0.00028619796
      %v419 = vmul.f32 %v416, %v418
      %v420 = vadd.f32 %v419, 0.0036580483
      %v421 = vmul.f32 %v416, %v420
      %v422 = vadd.f32 %v421, 0.05243302
      %v423 = vmul.f32 %v416, %v422
      %v424 = vadd.f32 %v423, 0.18741608
      %v425 = vmul.f32 %v416, %v424
      %v426 = vadd.f32 %v425, 1.1283791
      %v427 = vmul.f32 %v329, %v426
      %v428 = vmul.f32 %v416, 3.8918573e-05
      %v429 = vadd.f32 %v428, 0.001143296
      %v430 = vmul.f32 %v416, %v429
      %v431 = vadd.f32 %v430, 0.014752088
      %v432 = vmul.f32 %v416, %v431
      %v433 = vadd.f32 %v432, 0.112945676
      %v434 = vmul.f32 %v416, %v433
      %v435 = vadd.f32 %v434, 0.4994258
      %v436 = vmul.f32 %v416, %v435
      %v437 = vadd.f32 %v436, 1.0
      %v438 = vrcp.pop %v437
      %v439 = vmul.f32 %v437, %v438
      %v440 = vsub.f32 1.0, %v439
      %v441 = vmul.f32 %v438, %v440
      %v442 = vadd.f32 %v438, %v441
      %vm443 = vweird.f32 %v437
      %vm444 = vweird.f32 %v438
      %vm445 = vmor %vm443, %vm444
      %v446 = vsel %vm445, %v438, %v442
      %v447 = vand.u32 2147483647, %v437
      %vm448 = vcmp.eq.f32.partialorder %v447, 8.507059e+37
      %v449 = vand.u32 %v437, 2147483648
      %v450 = vor.u32 1.1754944e-38, %v449
      %v451 = vsel %vm448, %v450, %v446
      %v452 = vmul.f32 %v427, %v451
      %v453 = vmin.f32 %v452, 1.0
      %v454 = vmax.f32 %v453, -1.0
      %v455 = vmul.f32 %v330, %v330
      %v456 = vmin.f32 16.0, %v455
      %v457 = vmul.f32 %v456, 2.1237322e-06
      %v458 = vadd.f32 %v457, 0.00028619796
      %v459 = vmul.f32 %v456, %v458
      %v460 = vadd.f32 %v459, 0.0036580483
      %v461 = vmul.f32 %v456, %v460
      %v462 = vadd.f32 %v461, 0.05243302
      %v463 = vmul.f32 %v456, %v462
      %v464 = vadd.f32 %v463, 0.18741608
      %v465 = vmul.f32 %v456, %v464
      %v466 = vadd.f32 %v465, 1.1283791
      %v467 = vmul.f32 %v330, %v466
      %v468 = vmul.f32 %v456, 3.8918573e-05
      %v469 = vadd.f32 %v468, 0.001143296
      %v470 = vmul.f32 %v456, %v469
      %v471 = vadd.f32 %v470, 0.014752088
      %v472 = vmul.f32 %v456, %v471
      %v473 = vadd.f32 %v472, 0.112945676
      %v474 = vmul.f32 %v456, %v473
      %v475 = vadd.f32 %v474, 0.4994258
      %v476 = vmul.f32 %v456, %v475
      %v477 = vadd.f32 %v476, 1.0
      %v478 = vrcp.pop %v477
      %v479 = vmul.f32 %v477, %v478
      %v480 = vsub.f32 1.0, %v479
      %v481 = vmul.f32 %v478, %v480
      %v482 = vadd.f32 %v478, %v481
      %vm483 = vweird.f32 %v477
      %vm484 = vweird.f32 %v478
      %vm485 = vmor %vm483, %vm484
      %v486 = vsel %vm485, %v478, %v482
      %v487 = vand.u32 2147483647, %v477
      %vm488 = vcmp.eq.f32.partialorder %v487, 8.507059e+37
      %v489 = vand.u32 %v477, 2147483648
      %v490 = vor.u32 1.1754944e-38, %v489
      %v491 = vsel %vm488, %v490, %v486
      %v492 = vmul.f32 %v467, %v491
      %v493 = vmin.f32 %v492, 1.0
      %v494 = vmax.f32 %v493, -1.0
      %v495 = vmul.f32 %v331, %v331
      %v496 = vmin.f32 16.0, %v495
      %v497 = vmul.f32 %v496, 2.1237322e-06
      %v498 = vadd.f32 %v497, 0.00028619796
      %v499 = vmul.f32 %v496, %v498
      %v500 = vadd.f32 %v499, 0.0036580483
      %v501 = vmul.f32 %v496, %v500
      %v502 = vadd.f32 %v501, 0.05243302
      %v503 = vmul.f32 %v496, %v502
      %v504 = vadd.f32 %v503, 0.18741608
      %v505 = vmul.f32 %v496, %v504
      %v506 = vadd.f32 %v505, 1.1283791
      %v507 = vmul.f32 %v331, %v506
      %v508 = vmul.f32 %v496, 3.8918573e-05
      %v509 = vadd.f32 %v508, 0.001143296
      %v510 = vmul.f32 %v496, %v509
      %v511 = vadd.f32 %v510, 0.014752088
      %v512 = vmul.f32 %v496, %v511
      %v513 = vadd.f32 %v512, 0.112945676
      %v514 = vmul.f32 %v496, %v513
      %v515 = vadd.f32 %v514, 0.4994258
      %v516 = vmul.f32 %v496, %v515
      %v517 = vadd.f32 %v516, 1.0
      %v518 = vrcp.pop %v517
      %v519 = vmul.f32 %v517, %v518
      %v520 = vsub.f32 1.0, %v519
      %v521 = vmul.f32 %v518, %v520
      %v522 = vadd.f32 %v518, %v521
      %vm523 = vweird.f32 %v517
      %vm524 = vweird.f32 %v518
      %vm525 = vmor %vm523, %vm524
      %v526 = vsel %vm525, %v518, %v522
      %v527 = vand.u32 2147483647, %v517
      %vm528 = vcmp.eq.f32.partialorder %v527, 8.507059e+37
      %v529 = vand.u32 %v517, 2147483648
      %v530 = vor.u32 1.1754944e-38, %v529
      %v531 = vsel %vm528, %v530, %v526
      %v532 = vmul.f32 %v507, %v531
      %v533 = vmin.f32 %v532, 1.0
      %v534 = vmax.f32 %v533, -1.0
      %v535 = vmul.f32 %v332, %v332
      %v536 = vmin.f32 16.0, %v535
      %v537 = vmul.f32 %v536, 2.1237322e-06
      %v538 = vadd.f32 %v537, 0.00028619796
      %v539 = vmul.f32 %v536, %v538
      %v540 = vadd.f32 %v539, 0.0036580483
      %v541 = vmul.f32 %v536, %v540
      %v542 = vadd.f32 %v541, 0.05243302
      %v543 = vmul.f32 %v536, %v542
      %v544 = vadd.f32 %v543, 0.18741608
      %v545 = vmul.f32 %v536, %v544
      %v546 = vadd.f32 %v545, 1.1283791
      %v547 = vmul.f32 %v332, %v546
      %v548 = vmul.f32 %v536, 3.8918573e-05
      %v549 = vadd.f32 %v548, 0.001143296
      %v550 = vmul.f32 %v536, %v549
      %v551 = vadd.f32 %v550, 0.014752088
      %v552 = vmul.f32 %v536, %v551
      %v553 = vadd.f32 %v552, 0.112945676
      %v554 = vmul.f32 %v536, %v553
      %v555 = vadd.f32 %v554, 0.4994258
      %v556 = vmul.f32 %v536, %v555
      %v557 = vadd.f32 %v556, 1.0
      %v558 = vrcp.pop %v557
      %v559 = vmul.f32 %v557, %v558
      %v560 = vsub.f32 1.0, %v559
      %v561 = vmul.f32 %v558, %v560
      %v562 = vadd.f32 %v558, %v561
      %vm563 = vweird.f32 %v557
      %vm564 = vweird.f32 %v558
      %vm565 = vmor %vm563, %vm564
      %v566 = vsel %vm565, %v558, %v562
      %v567 = vand.u32 2147483647, %v557
      %vm568 = vcmp.eq.f32.partialorder %v567, 8.507059e+37
      %v569 = vand.u32 %v557, 2147483648
      %v570 = vor.u32 1.1754944e-38, %v569
      %v571 = vsel %vm568, %v570, %v566
      %v572 = vmul.f32 %v547, %v571
      %v573 = vmin.f32 %v572, 1.0
      %v574 = vmax.f32 %v573, -1.0
      %v575 = vmul.f32 %v333, %v333
      %v576 = vmin.f32 16.0, %v575
      %v577 = vmul.f32 %v576, 2.1237322e-06
      %v578 = vadd.f32 %v577, 0.00028619796
      %v579 = vmul.f32 %v576, %v578
      %v580 = vadd.f32 %v579, 0.0036580483
      %v581 = vmul.f32 %v576, %v580
      %v582 = vadd.f32 %v581, 0.05243302
      %v583 = vmul.f32 %v576, %v582
      %v584 = vadd.f32 %v583, 0.18741608
      %v585 = vmul.f32 %v576, %v584
      %v586 = vadd.f32 %v585, 1.1283791
      %v587 = vmul.f32 %v333, %v586
      %v588 = vmul.f32 %v576, 3.8918573e-05
      %v589 = vadd.f32 %v588, 0.001143296
      %v590 = vmul.f32 %v576, %v589
      %v591 = vadd.f32 %v590, 0.014752088
      %v592 = vmul.f32 %v576, %v591
      %v593 = vadd.f32 %v592, 0.112945676
      %v594 = vmul.f32 %v576, %v593
      %v595 = vadd.f32 %v594, 0.4994258
      %v596 = vmul.f32 %v576, %v595
      %v597 = vadd.f32 %v596, 1.0
      %v598 = vrcp.pop %v597
      %v599 = vmul.f32 %v597, %v598
      %v600 = vsub.f32 1.0, %v599
      %v601 = vmul.f32 %v598, %v600
      %v602 = vadd.f32 %v598, %v601
      %vm603 = vweird.f32 %v597
      %vm604 = vweird.f32 %v598
      %vm605 = vmor %vm603, %vm604
      %v606 = vsel %vm605, %v598, %v602
      %v607 = vand.u32 2147483647, %v597
      %vm608 = vcmp.eq.f32.partialorder %v607, 8.507059e+37
      %v609 = vand.u32 %v597, 2147483648
      %v610 = vor.u32 1.1754944e-38, %v609
      %v611 = vsel %vm608, %v610, %v606
      %v612 = vmul.f32 %v587, %v611
      %v613 = vmin.f32 %v612, 1.0
      %v614 = vmax.f32 %v613, -1.0
      %v615 = vmul.f32 %v334, %v334
      %v616 = vmin.f32 16.0, %v615
      %v617 = vmul.f32 %v616, 2.1237322e-06
      %v618 = vadd.f32 %v617, 0.00028619796
      %v619 = vmul.f32 %v616, %v618
      %v620 = vadd.f32 %v619, 0.0036580483
      %v621 = vmul.f32 %v616, %v620
      %v622 = vadd.f32 %v621, 0.05243302
      %v623 = vmul.f32 %v616, %v622
      %v624 = vadd.f32 %v623, 0.18741608
      %v625 = vmul.f32 %v616, %v624
      %v626 = vadd.f32 %v625, 1.1283791
      %v627 = vmul.f32 %v334, %v626
      %v628 = vmul.f32 %v616, 3.8918573e-05
      %v629 = vadd.f32 %v628, 0.001143296
      %v630 = vmul.f32 %v616, %v629
      %v631 = vadd.f32 %v630, 0.014752088
      %v632 = vmul.f32 %v616, %v631
      %v633 = vadd.f32 %v632, 0.112945676
      %v634 = vmul.f32 %v616, %v633
      %v635 = vadd.f32 %v634, 0.4994258
      %v636 = vmul.f32 %v616, %v635
      %v637 = vadd.f32 %v636, 1.0
      %v638 = vrcp.pop %v637
      %v639 = vmul.f32 %v637, %v638
      %v640 = vsub.f32 1.0, %v639
      %v641 = vmul.f32 %v638, %v640
      %v642 = vadd.f32 %v638, %v641
      %vm643 = vweird.f32 %v637
      %vm644 = vweird.f32 %v638
      %vm645 = vmor %vm643, %vm644
      %v646 = vsel %vm645, %v638, %v642
      %v647 = vand.u32 2147483647, %v637
      %vm648 = vcmp.eq.f32.partialorder %v647, 8.507059e+37
      %v649 = vand.u32 %v637, 2147483648
      %v650 = vor.u32 1.1754944e-38, %v649
      %v651 = vsel %vm648, %v650, %v646
      %v652 = vmul.f32 %v627, %v651
      %v653 = vmin.f32 %v652, 1.0
      %v654 = vmax.f32 %v653, -1.0
      %v655 = vadd.f32 %v374, 1.0
      %v656 = vadd.f32 %v414, 1.0
      %v657 = vadd.f32 %v454, 1.0
      %v658 = vadd.f32 %v494, 1.0
      %v659 = vadd.f32 %v534, 1.0
      %v660 = vadd.f32 %v574, 1.0
      %v661 = vadd.f32 %v614, 1.0
      %v662 = vadd.f32 %v654, 1.0
      %v663 = vmul.f32 %v319, %v655
      %v664 = vmul.f32 %v320, %v656
      %v665 = vmul.f32 %v321, %v657
      %v666 = vmul.f32 %v322, %v658
      %v667 = vmul.f32 %v323, %v659
      %v668 = vmul.f32 %v324, %v660
      %v669 = vmul.f32 %v325, %v661
      %v670 = vmul.f32 %v326, %v662
      %671 = vst [vmem:[%s208] sm:$0xff] %v663
      %672 = vst [vmem:[%s208 + $0x8] sm:$0xff] %v664
      %673 = vst [vmem:[%s208 + $0x10] sm:$0xff] %v665
      %674 = vst [vmem:[%s208 + $0x18] sm:$0xff] %v666
      %675 = vst [vmem:[%s208 + $0x20] sm:$0xff] %v667
      %676 = vst [vmem:[%s208 + $0x28] sm:$0xff] %v668
      %677 = vst [vmem:[%s208 + $0x30] sm:$0xff] %v669
      %678 = vst [vmem:[%s208 + $0x38] sm:$0xff] %v670
      %s679 = smul.u32 2, %s19
      %p680 = scmp.lt.s32.totalorder %s18, 1
      %s681 = scalar_select %p680, %s18, 1
      %p682 = scmp.lt.s32.totalorder %s679, 1
      %s683 = scalar_select %p682, %s679, 1
      %s684 = smul.addr %s681, 8
      %s685 = sadd.s32 %s683, %s684
      %s686 = smul.addr %s685, 8
      %s687 = scalar_lea.vmem %s3, %s686
      // Predicated region
      $region33: #{image_feature_extractor_forward.1} parent=31 // pred_check
        %p688 = pneg %p116
      $region34: #{image_feature_extractor_forward.1} parent=31 // pred_check_branch
        %690 = sbr.rel (%p688) target = $region36
      $region35: #{image_feature_extractor_forward.1} parent=31 // pred_region
        %s691 = smul.u32 2, %s19
      $region36: #{image_feature_extractor_forward.1} parent=31 // pred_fallthru
        _
    $region32: #{image_feature_extractor_forward.1} parent=5 // pred_fallthru
      _
    %p692 = scmp.le.s32.totalorder 2, %s9
    // Predicated region
    $region37: #{image_feature_extractor_forward.1} parent=5 // pred_check
      %p693 = pneg %p692
    $region38: #{image_feature_extractor_forward.1} parent=5 // pred_check_branch
      %695 = sbr.rel (%p693) target = $region40
    $region39: #{image_feature_extractor_forward.1} parent=5 // pred_region
      %s696 = ssub.s32 %s9, 2
      // Predicated region
      $region41: #{image_feature_extractor_forward.1} parent=39 // pred_check
        %p697 = pneg %p122
      $region42: #{image_feature_extractor_forward.1} parent=39 // pred_check_branch
        %699 = sbr.rel (%p697) target = $region44
      $region43: #{image_feature_extractor_forward.1} parent=39 // pred_region
        %s700 = smul.u32 2, %s21
        %p701 = scmp.lt.s32.totalorder %s20, 1
        %s702 = scalar_select %p701, %s20, 1
        %p703 = scmp.lt.s32.totalorder %s700, 1
        %s704 = scalar_select %p703, %s700, 1
        %s705 = smul.addr %s702, 8
        %s706 = sadd.s32 %s704, %s705
        %s707 = smul.addr %s706, 8
        %s708 = scalar_lea.vmem %s3, %s707
      $region44: #{image_feature_extractor_forward.1} parent=39 // pred_fallthru
        _
    $region40: #{image_feature_extractor_forward.1} parent=5 // pred_fallthru
      _
  $region6: #{image_feature_extractor_forward.1} parent=0 // loop_footer
    %s13 = sadd.s32 1, %s9
  $region7: #{image_feature_extractor_forward.1} parent=0 // loop_footer_branch
    %8 = sbr.rel target = $region3
  $region8: #{image_feature_extractor_forward.1} parent=0 // loop_exit
    _

</llo_original>
